<compile_context>
chip_gen: v5e
topology: v5e:2x2
jax: 0.10.0
libtpu: 0.0.40
codegen_flags: <defaults>
</compile_context>

<pallas_src>
import functools

import jax
import jax.numpy as jnp
from jax.experimental import pallas as pl
from jax.experimental.pallas import tpu as pltpu


BN_EPS = 1e-5
LANE = 128


def _round_up(n, m):
    return ((n + m - 1) // m) * m


def age_module_kernel(
    x_ref,            # (TB, 512)  f32 or bf16
    wf_ref,           # (512, age_pad + 256) bf16    fused [Wa_pad | W1]
    bf_ref,           # (1, age_pad + 256)  f32      fused [ba_pad | b1]
    w2_ref,           # (256, grp_pad) bf16          BN folded into W2 (lane-offset if packed)
    b2_ref,           # (1, grp_pad)  f32            BN folded into b2 (lane-offset if packed)
    *out_refs,        # packed: (TB, 128) f32   /   unpacked: (TB, age_pad), (TB, grp_pad) f32
    age_pad,
    packed,
):
    # Cast x once so both matmuls run the native bf16 MXU path; accumulate in f32.
    x = x_ref[...].astype(jnp.bfloat16)

    # Single fused x-side matmul for both heads.
    y = jnp.dot(x, wf_ref[...], preferred_element_type=jnp.float32) + bf_ref[...]

    # Head 1: age logits (lanes beyond num_ages are exact zeros by construction).
    age = y[:, :age_pad]

    # Head 2: ReLU -> (BatchNorm folded into W2'/b2') -> Linear.  Dropout: identity (eval).
    h = jnp.maximum(y[:, age_pad:], 0.0).astype(jnp.bfloat16)
    grp = jnp.dot(h, w2_ref[...], preferred_element_type=jnp.float32) + b2_ref[...]

    if packed:
        # Single lane-dense 128-wide slab: age occupies lanes [0, num_ages),
        # grp was pre-shifted to lanes [num_ages, num_ages+num_groups) via the
        # host-side weight/bias placement, and both are exactly zero elsewhere,
        # so packing is a plain VPU add (no roll / mask needed).
        out_ref, = out_refs
        out_ref[...] = (age + grp).astype(out_ref.dtype)
    else:
        age_ref, grp_ref = out_refs
        age_ref[...] = age.astype(age_ref.dtype)
        grp_ref[...] = grp.astype(grp_ref.dtype)


def prepare_params(params):
    """Fold eval-mode BN into W2/b2, lane-pad both heads, fuse the x-side weights,
    cast weights to bf16, and (when both heads fit in 128 lanes) pre-place the
    group head at lane offset num_ages so the kernel can emit one packed slab.
    Run once outside the serving loop; re-run whenever BN running stats change."""
    wa, ba = params["wa"], params["ba"].reshape(-1)
    w1, b1 = params["w1"], params["b1"].reshape(-1)
    w2, b2 = params["w2"], params["b2"].reshape(-1)
    gamma = params["gamma"].reshape(-1)
    beta = params["beta"].reshape(-1)
    mean = params["mean"].reshape(-1)
    var = params["var"].reshape(-1)

    num_ages = wa.shape[1]
    num_groups = w2.shape[1]
    packed = (num_ages + num_groups) <= LANE
    age_pad = _round_up(num_ages, LANE)                 # == 128 when packed
    grp_pad = LANE if packed else _round_up(num_groups, LANE)
    grp_off = num_ages if packed else 0

    # BN(h) @ W2 + b2  ==  h @ (scale[:,None]*W2) + (shift @ W2 + b2)
    scale = gamma * jax.lax.rsqrt(var + BN_EPS)         # (256,)
    shift = beta - mean * scale                         # (256,)
    w2f = scale[:, None] * w2                           # (256, G)
    b2f = b2 + shift @ w2                               # (G,)

    # Lane-pad both heads (unmasked lane-dense stores).  In packed mode the grp
    # head lands at lane offset num_ages; its other lanes are exact zeros.
    wa_p = jnp.zeros((512, age_pad), jnp.float32).at[:, :num_ages].set(wa)
    ba_p = jnp.zeros((age_pad,), jnp.float32).at[:num_ages].set(ba)
    w2_p = jnp.zeros((256, grp_pad), jnp.float32).at[:, grp_off:grp_off + num_groups].set(w2f)
    b2_p = jnp.zeros((grp_pad,), jnp.float32).at[grp_off:grp_off + num_groups].set(b2f)

    # Fuse the two x-side matmuls into one MXU weight.
    wf = jnp.concatenate([wa_p, w1], axis=1).astype(jnp.bfloat16)   # (512, age_pad+256)
    bf = jnp.concatenate([ba_p, b1]).reshape(1, -1)                 # (1, age_pad+256) f32

    return {
        "wf": wf,
        "bf": bf,
        "w2": w2_p.astype(jnp.bfloat16),
        "b2": b2_p.reshape(1, -1),
        "num_ages": num_ages,
        "num_age_groups": num_groups,
        "age_pad": age_pad,
        "grp_pad": grp_pad,
        "packed": packed,
    }


def _choose_tb(B):
    """Batch tile: large tiles approach the HBM roofline (~85% at 512-1024 vs
    ~29% at 128); medium batches split into two tiles so v7x's two TensorCores
    both get work; tiny batches use one 8-row tile.  Always a multiple of 8."""
    if B >= 2048:
        return 1024
    half = _round_up(pl.cdiv(B, 2), 8)
    return max(half, 8)


def age_module_forward(x, prep, *, return_padded=False):
    """x: (B, 512), float32 or bfloat16 (feed bf16 from the producer when possible
    to halve the dominant HBM read; the kernel casts/accumulates the same way).

    return_padded=True returns the raw kernel output (single packed (B,128) slab,
    or the two 128-padded slabs) so a downstream consumer can index it directly
    and skip the post-kernel slice copies (pure overhead in a mem-bound kernel).
    """
    B, D = x.shape
    assert D == 512
    age_pad = prep["age_pad"]
    grp_pad = prep["grp_pad"]
    num_ages = prep["num_ages"]
    num_groups = prep["num_age_groups"]
    packed = prep["packed"]
    fused = age_pad + 256

    # cdiv grid + wrapper-side zero padding of B: keeps pipelining / megacore
    # split alive and bounds VMEM for any batch size (no TB=B fallback).
    TB = _choose_tb(B)
    B_pad = _round_up(B, TB)
    if B_pad != B:
        x = jnp.pad(x, ((0, B_pad - B), (0, 0)))
    grid = (B_pad // TB,)

    kernel = functools.partial(age_module_kernel, age_pad=age_pad, packed=packed)

    # Weights map to block (0,0) on every step -> DMA'd once, VMEM-resident.
    in_specs = [
        pl.BlockSpec((TB, 512), lambda i: (i, 0)),        # x, tiled over batch
        pl.BlockSpec((512, fused), lambda i: (0, 0)),     # fused [Wa_pad | W1]
        pl.BlockSpec((1, fused), lambda i: (0, 0)),       # fused [ba_pad | b1]
        pl.BlockSpec((256, grp_pad), lambda i: (0, 0)),   # folded W2
        pl.BlockSpec((1, grp_pad), lambda i: (0, 0)),     # folded b2
    ]

    if packed:
        out_shape = jax.ShapeDtypeStruct((B_pad, LANE), jnp.float32)
        out_specs = pl.BlockSpec((TB, LANE), lambda i: (i, 0))
    else:
        out_shape = (
            jax.ShapeDtypeStruct((B_pad, age_pad), jnp.float32),
            jax.ShapeDtypeStruct((B_pad, grp_pad), jnp.float32),
        )
        out_specs = (
            pl.BlockSpec((TB, age_pad), lambda i: (i, 0)),
            pl.BlockSpec((TB, grp_pad), lambda i: (i, 0)),
        )

    out = pl.pallas_call(
        kernel,
        out_shape=out_shape,
        grid=grid,
        in_specs=in_specs,
        out_specs=out_specs,
        compiler_params=pltpu.CompilerParams(
            dimension_semantics=("parallel",),   # batch tiles split across v7x's 2 TCs
        ),
    )(x, prep["wf"], prep["bf"], prep["w2"], prep["b2"])

    if return_padded:
        return out

    if packed:
        slab = out[:B]
        return slab[:, :num_ages], slab[:, num_ages:num_ages + num_groups]
    age_full, grp_full = out
    return age_full[:B, :num_ages], grp_full[:B, :num_groups]


def init_params(key, num_ages, num_age_groups):
    """Deterministic synthetic parameters matching the PyTorch module shapes."""
    ks = jax.random.split(key, 6)
    scale512 = 1.0 / jnp.sqrt(512.0)
    scale256 = 1.0 / jnp.sqrt(256.0)
    return {
        # age_classifier: Linear(512, num_ages)
        "wa": jax.random.uniform(ks[0], (512, num_ages), jnp.float32, -scale512, scale512),
        "ba": jax.random.uniform(ks[1], (1, num_ages), jnp.float32, -scale512, scale512),
        # age_group_classifier[0]: Linear(512, 256)
        "w1": jax.random.uniform(ks[2], (512, 256), jnp.float32, -scale512, scale512),
        "b1": jax.random.uniform(ks[3], (1, 256), jnp.float32, -scale512, scale512),
        # age_group_classifier[2]: BatchNorm1d(256), default init + running stats
        "gamma": jnp.ones((1, 256), jnp.float32),
        "beta": jnp.zeros((1, 256), jnp.float32),
        "mean": jnp.zeros((1, 256), jnp.float32),
        "var": jnp.ones((1, 256), jnp.float32),
        # age_group_classifier[4]: Linear(256, num_age_groups)
        "w2": jax.random.uniform(ks[4], (256, num_age_groups), jnp.float32, -scale256, scale256),
        "b2": jax.random.uniform(ks[5], (1, num_age_groups), jnp.float32, -scale256, scale256),
    }


def reference_forward(x, p):
    age = x @ p["wa"] + p["ba"]
    h = jnp.maximum(x @ p["w1"] + p["b1"], 0.0)
    h = (h - p["mean"]) / jnp.sqrt(p["var"] + BN_EPS) * p["gamma"] + p["beta"]
    grp = h @ p["w2"] + p["b2"]
    return age, grp


if __name__ == "__main__":
    key = jax.random.PRNGKey(0)
    kx1, kp1, kx2, kp2 = jax.random.split(key, 4)

    # --- Primary config: small batch, packed single-slab output path ---------
    B, NUM_AGES, NUM_AGE_GROUPS = 8, 16, 8
    x = jax.random.normal(kx1, (B, 512), jnp.float32)
    params = init_params(kp1, NUM_AGES, NUM_AGE_GROUPS)
    prep = prepare_params(params)       # one-time: fold BN, pad, offset, fuse, bf16

    age_pred, age_group_pred = age_module_forward(x, prep)
    age_pred = jax.block_until_ready(age_pred)
    age_group_pred = jax.block_until_ready(age_group_pred)

    ref_age, ref_grp = reference_forward(x, params)
    assert age_pred.shape == (B, NUM_AGES)
    assert age_group_pred.shape == (B, NUM_AGE_GROUPS)
    # bf16 weights/activations with f32 accumulation -> loose tolerance.
    assert jnp.allclose(age_pred, ref_age, atol=2e-2, rtol=2e-2)
    assert jnp.allclose(age_group_pred, ref_grp, atol=2e-2, rtol=2e-2)

    # --- Secondary config: non-multiple batch + wide heads -------------------
    # Exercises the cdiv-grid batch padding path and the two-slab fallback.
    B2, NA2, NG2 = 5, 120, 16
    x2 = jax.random.normal(kx2, (B2, 512), jnp.float32)
    params2 = init_params(kp2, NA2, NG2)
    prep2 = prepare_params(params2)
    assert not prep2["packed"]

    age2, grp2 = age_module_forward(x2, prep2)
    age2 = jax.block_until_ready(age2)
    grp2 = jax.block_until_ready(grp2)

    ref_age2, ref_grp2 = reference_forward(x2, params2)
    assert age2.shape == (B2, NA2)
    assert grp2.shape == (B2, NG2)
    assert jnp.allclose(age2, ref_age2, atol=2e-2, rtol=2e-2)
    assert jnp.allclose(grp2, ref_grp2, atol=2e-2, rtol=2e-2)

    print("KERNEL_OK")
</pallas_src>

<mosaic_0001>
module attributes {stable_mosaic.version = 11 : i64} {
  func.func @age_module_kernel(%arg0: i32, %arg1: memref<8x512xf32, #tpu.memory_space<vmem>>, %arg2: memref<512x384xbf16, #tpu.memory_space<vmem>>, %arg3: memref<1x384xf32, #tpu.memory_space<vmem>>, %arg4: memref<256x128xbf16, #tpu.memory_space<vmem>>, %arg5: memref<1x128xf32, #tpu.memory_space<vmem>>, %arg6: memref<8x128xf32, #tpu.memory_space<vmem>>) attributes {dimension_semantics = [#tpu.dimension_semantics<parallel>], iteration_bounds = array<i64: 1>, scalar_prefetch = 0 : i64, scratch_operands = 0 : i64, tpu.core_type = #tpu.core_type<tc>, window_params = [{transform_indices = @transform_0, window_bounds = array<i64: 8, 512>}, {pipeline_mode = #tpu.pipeline_mode<synchronous>, transform_indices = @transform_1, window_bounds = array<i64: 512, 384>}, {pipeline_mode = #tpu.pipeline_mode<synchronous>, transform_indices = @transform_2, window_bounds = array<i64: 1, 384>}, {pipeline_mode = #tpu.pipeline_mode<synchronous>, transform_indices = @transform_3, window_bounds = array<i64: 256, 128>}, {pipeline_mode = #tpu.pipeline_mode<synchronous>, transform_indices = @transform_4, window_bounds = array<i64: 1, 128>}, {transform_indices = @transform_5, window_bounds = array<i64: 8, 128>}]} {
    %c0 = arith.constant 0 : index
    %c0_0 = arith.constant 0 : index
    %0 = vector.load %arg1[%c0, %c0_0] : memref<8x512xf32, #tpu.memory_space<vmem>>, vector<8x512xf32>
    %1 = arith.truncf %0 : vector<8x512xf32> to vector<8x512xbf16>
    %c0_1 = arith.constant 0 : index
    %c0_2 = arith.constant 0 : index
    %2 = vector.load %arg2[%c0_1, %c0_2] : memref<512x384xbf16, #tpu.memory_space<vmem>>, vector<512x384xbf16>
    %cst = arith.constant dense<0.000000e+00> : vector<8x384xf32>
    %3 = tpu.matmul %1, %2, %cst {dimension_numbers = #tpu.dot_dimension_numbers<[1], [0], [0], [1], [0, 0, 1, 1], [], []>} : vector<8x512xbf16>, vector<512x384xbf16>, vector<8x384xf32> -> vector<8x384xf32>
    %c0_3 = arith.constant 0 : index
    %c0_4 = arith.constant 0 : index
    %4 = vector.load %arg3[%c0_3, %c0_4] : memref<1x384xf32, #tpu.memory_space<vmem>>, vector<1x384xf32>
    %5 = vector.broadcast %4 : vector<1x384xf32> to vector<8x384xf32>
    %6 = arith.addf %3, %5 : vector<8x384xf32>
    %7 = vector.extract_strided_slice %6 {offsets = [0, 0], sizes = [8, 128], strides = [1, 1]} : vector<8x384xf32> to vector<8x128xf32>
    %8 = vector.extract_strided_slice %6 {offsets = [0, 128], sizes = [8, 256], strides = [1, 1]} : vector<8x384xf32> to vector<8x256xf32>
    %cst_5 = arith.constant 0.000000e+00 : f32
    %9 = vector.broadcast %cst_5 : f32 to vector<8x256xf32>
    %10 = arith.maximumf %8, %9 : vector<8x256xf32>
    %11 = arith.truncf %10 : vector<8x256xf32> to vector<8x256xbf16>
    %c0_6 = arith.constant 0 : index
    %c0_7 = arith.constant 0 : index
    %12 = vector.load %arg4[%c0_6, %c0_7] : memref<256x128xbf16, #tpu.memory_space<vmem>>, vector<256x128xbf16>
    %cst_8 = arith.constant dense<0.000000e+00> : vector<8x128xf32>
    %13 = tpu.matmul %11, %12, %cst_8 {dimension_numbers = #tpu.dot_dimension_numbers<[1], [0], [0], [1], [0, 0, 1, 1], [], []>} : vector<8x256xbf16>, vector<256x128xbf16>, vector<8x128xf32> -> vector<8x128xf32>
    %c0_9 = arith.constant 0 : index
    %c0_10 = arith.constant 0 : index
    %14 = vector.load %arg5[%c0_9, %c0_10] : memref<1x128xf32, #tpu.memory_space<vmem>>, vector<1x128xf32>
    %15 = vector.broadcast %14 : vector<1x128xf32> to vector<8x128xf32>
    %16 = arith.addf %13, %15 : vector<8x128xf32>
    %17 = arith.addf %7, %16 : vector<8x128xf32>
    %c0_11 = arith.constant 0 : index
    %c0_12 = arith.constant 0 : index
    %18 = vector.load %arg6[%c0_11, %c0_12] : memref<8x128xf32, #tpu.memory_space<vmem>>, vector<8x128xf32>
    tpu.vector_store %arg6[%c0_11, %c0_12], %17 {strides = array<i32>} : memref<8x128xf32, #tpu.memory_space<vmem>>, vector<8x128xf32>,
    return
  }
  func.func @transform_0(%arg0: i32) -> (i32, i32) {
    %c0_i32 = arith.constant 0 : i32
    %c0_i32_0 = arith.constant 0 : i32
    return %arg0, %c0_i32 : i32, i32
  }
  func.func @transform_1(%arg0: i32) -> (i32, i32) {
    %c0_i32 = arith.constant 0 : i32
    %c0_i32_0 = arith.constant 0 : i32
    %c0_i32_1 = arith.constant 0 : i32
    return %c0_i32, %c0_i32_0 : i32, i32
  }
  func.func @transform_2(%arg0: i32) -> (i32, i32) {
    %c0_i32 = arith.constant 0 : i32
    %c0_i32_0 = arith.constant 0 : i32
    %c0_i32_1 = arith.constant 0 : i32
    return %c0_i32, %c0_i32_0 : i32, i32
  }
  func.func @transform_3(%arg0: i32) -> (i32, i32) {
    %c0_i32 = arith.constant 0 : i32
    %c0_i32_0 = arith.constant 0 : i32
    %c0_i32_1 = arith.constant 0 : i32
    return %c0_i32, %c0_i32_0 : i32, i32
  }
  func.func @transform_4(%arg0: i32) -> (i32, i32) {
    %c0_i32 = arith.constant 0 : i32
    %c0_i32_0 = arith.constant 0 : i32
    %c0_i32_1 = arith.constant 0 : i32
    return %c0_i32, %c0_i32_0 : i32, i32
  }
  func.func @transform_5(%arg0: i32) -> (i32, i32) {
    %c0_i32 = arith.constant 0 : i32
    %c0_i32_0 = arith.constant 0 : i32
    return %arg0, %c0_i32 : i32, i32
  }
}

</mosaic_0001>

<llo_original>
// kernel: tpu_custom_call.1
$region0: #{tpu_custom_call.1}
  #allocation0 [shape = 'u32[]', space=smem, size = 0x4, offset = 0x4, fixed_abs, tag = 'smem constant byte address 0x4 - core index']
  #allocation1 [shape = 'u32[72,128]{1,0:T(1,128)}', space=vmem, size = 0x9000, scoped, tag = 'internal scratch']
  %s0 = inlined_call_operand.hbm [shape: f32[8,512], index: 0, kind: input, shape index: {}]
  %s1 = inlined_call_operand.hbm [shape: bf16[512,384], index: 1, kind: input, shape index: {}]
  %s2 = inlined_call_operand.hbm [shape: f32[1,384], index: 2, kind: input, shape index: {}]
  %s3 = inlined_call_operand.hbm [shape: bf16[256,128], index: 3, kind: input, shape index: {}]
  %s4 = inlined_call_operand.vmem [shape: f32[1,128], index: 4, kind: input, shape index: {}]
  %s5 = inlined_call_operand.hbm [shape: f32[8,128], index: 5, kind: output, shape index: {}]
  %s6 = sld [smem:[#allocation0]]
  $region46: #{tpu_custom_call.1} parent=0
    _
  %s8 = ssub.s32 1, %s6
  %s9 = scalar_select 0, %s8, %s6
  $region1: #{tpu_custom_call.1} parent=0
    #allocation2 [shape = 'u8[16384]{0}', space=vmem, size = 0x4000, scoped, tag = 'input window, operand 0, single buffered']
    #allocation3 [shape = 's32[1]{0}', space=sflag, size = 0x4, scoped, tag = 'scoped memory for tpu_custom_call.1']
    #allocation4 [shape = 's32[1]{0}', space=sflag, size = 0x4, scoped, tag = 'scoped memory for tpu_custom_call.1']
    #allocation5 [shape = 'u8[393216]{0}', space=vmem, size = 0x60000, scoped, tag = 'input window, operand 1, single buffered']
    #allocation6 [shape = 's32[1]{0}', space=sflag, size = 0x4, scoped, tag = 'scoped memory for tpu_custom_call.1']
    #allocation7 [shape = 'u8[1536]{0}', space=vmem, size = 0x800, scoped, tag = 'input window, operand 2, single buffered']
    #allocation8 [shape = 'u8[65536]{0}', space=vmem, size = 0x10000, scoped, tag = 'input window, operand 3, single buffered']
    #allocation9 [shape = 's32[1]{0}', space=sflag, size = 0x4, scoped, tag = 'scoped memory for tpu_custom_call.1']
    #allocation10 [shape = 'u8[4096]{0}', space=vmem, size = 0x1000, scoped, tag = 'output window, operand 0, single buffered']
    %10 = vsyncpa [#allocation3], 0
    %11 = vsyncpa [#allocation6], 0
    %12 = vsyncpa [#allocation9], 0
    %13 = vsyncpa [#allocation4], 0
    // Predicated region
    $region2: #{tpu_custom_call.1} parent=1 // pred_check
      _
    $region3: #{tpu_custom_call.1} parent=1 // pred_check_branch
      %15 = sbr.rel (0) target = $region5
    $region4: #{tpu_custom_call.1} parent=1 // pred_region
      %17 = vsyncadd [#allocation3], 0
      %s19 = sshll.u32 %s0, 4
      %s20 = int_to_ptr.hbm [resolvable:$true] %s19
      %s21 = sshll.u32 [#allocation2], 4
      %s22 = int_to_ptr.vmem [resolvable:$true] %s21
      %24 = dma.hbm_to_vmem [thread:$0]  %s20, 512, %s22, [#allocation3]
    $region5: #{tpu_custom_call.1} parent=1 // pred_fallthru
      _
    // Predicated region
    $region6: #{tpu_custom_call.1} parent=1 // pred_check
      _
    $region7: #{tpu_custom_call.1} parent=1 // pred_check_branch
      %26 = sbr.rel (0) target = $region9
    $region8: #{tpu_custom_call.1} parent=1 // pred_region
      %28 = vsyncadd [#allocation6], 0
      %s29 = sshll.u32 %s1, 4
      %s30 = int_to_ptr.hbm [resolvable:$true] %s29
      %s31 = sshll.u32 [#allocation5], 4
      %s32 = int_to_ptr.vmem [resolvable:$true] %s31
      %37 = dma.hbm_to_vmem [thread:$0]  %s30, 12288, %s32, [#allocation6], 192, 192, 12
    $region9: #{tpu_custom_call.1} parent=1 // pred_fallthru
      _
    // Predicated region
    $region10: #{tpu_custom_call.1} parent=1 // pred_check
      _
    $region11: #{tpu_custom_call.1} parent=1 // pred_check_branch
      %39 = sbr.rel (0) target = $region13
    $region12: #{tpu_custom_call.1} parent=1 // pred_region
      %41 = vsyncadd [#allocation6], 0
      %s43 = sshll.u32 %s2, 4
      %s44 = int_to_ptr.hbm [resolvable:$true] %s43
      %s45 = sshll.u32 [#allocation7], 4
      %s46 = int_to_ptr.vmem [resolvable:$true] %s45
      %48 = dma.hbm_to_vmem [thread:$0]  %s44, 48, %s46, [#allocation6]
    $region13: #{tpu_custom_call.1} parent=1 // pred_fallthru
      _
    // Predicated region
    $region14: #{tpu_custom_call.1} parent=1 // pred_check
      _
    $region15: #{tpu_custom_call.1} parent=1 // pred_check_branch
      %50 = sbr.rel (0) target = $region17
    $region16: #{tpu_custom_call.1} parent=1 // pred_region
      %52 = vsyncadd [#allocation9], 0
      %s53 = sshll.u32 %s3, 4
      %s54 = int_to_ptr.hbm [resolvable:$true] %s53
      %s55 = sshll.u32 [#allocation8], 4
      %s56 = int_to_ptr.vmem [resolvable:$true] %s55
      %61 = dma.hbm_to_vmem [thread:$0]  %s54, 2048, %s56, [#allocation9], 64, 64, 4
    $region17: #{tpu_custom_call.1} parent=1 // pred_fallthru
      _
    // Predicated region
    $region18: #{tpu_custom_call.1} parent=1 // pred_check
      _
    $region19: #{tpu_custom_call.1} parent=1 // pred_check_branch
      %63 = sbr.rel (0) target = $region21
    $region20: #{tpu_custom_call.1} parent=1 // pred_region
      _
    $region21: #{tpu_custom_call.1} parent=1 // pred_fallthru
      _
    // Predicated region
    $region22: #{tpu_custom_call.1} parent=1 // pred_check
      _
    $region23: #{tpu_custom_call.1} parent=1 // pred_check_branch
      %65 = sbr.rel (0) target = $region25
    $region24: #{tpu_custom_call.1} parent=1 // pred_region
      %67 = dma.done [#allocation3], 512
    $region25: #{tpu_custom_call.1} parent=1 // pred_fallthru
      _
    // Predicated region
    $region26: #{tpu_custom_call.1} parent=1 // pred_check
      _
    $region27: #{tpu_custom_call.1} parent=1 // pred_check_branch
      %69 = sbr.rel (0) target = $region29
    $region28: #{tpu_custom_call.1} parent=1 // pred_region
      %71 = dma.done [#allocation6], 12288
    $region29: #{tpu_custom_call.1} parent=1 // pred_fallthru
      _
    // Predicated region
    $region30: #{tpu_custom_call.1} parent=1 // pred_check
      _
    $region31: #{tpu_custom_call.1} parent=1 // pred_check_branch
      %73 = sbr.rel (0) target = $region33
    $region32: #{tpu_custom_call.1} parent=1 // pred_region
      %75 = dma.done [#allocation6], 48
    $region33: #{tpu_custom_call.1} parent=1 // pred_fallthru
      _
    // Predicated region
    $region34: #{tpu_custom_call.1} parent=1 // pred_check
      _
    $region35: #{tpu_custom_call.1} parent=1 // pred_check_branch
      %77 = sbr.rel (0) target = $region37
    $region36: #{tpu_custom_call.1} parent=1 // pred_region
      %79 = dma.done [#allocation9], 2048
    $region37: #{tpu_custom_call.1} parent=1 // pred_fallthru
      _
    %v80 = vld [vmem:[#allocation2] sm:$0xff]
    %v81 = vld [vmem:[#allocation2 + $0x8] sm:$0xff]
    %v82 = vld [vmem:[#allocation2 + $0x10] sm:$0xff]
    %v83 = vld [vmem:[#allocation2 + $0x18] sm:$0xff]
    %v84 = vpack.c.bf16 %v80, %v80
    %v85 = vpack.c.bf16 %v81, %v81
    %v86 = vpack.c.bf16 %v82, %v82
    %v87 = vpack.c.bf16 %v83, %v83
    %v88 = vld [vmem:[#allocation5] sm:$0xff]
    %v89 = vld [vmem:[#allocation5 + $0x8] sm:$0xf]
    %v90 = vld [vmem:[#allocation5 + $0xc] sm:$0xff]
    %v91 = vld [vmem:[#allocation5 + $0x14] sm:$0xf]
    %v92 = vld [vmem:[#allocation5 + $0x18] sm:$0xff]
    %v93 = vld [vmem:[#allocation5 + $0x20] sm:$0xf]
    %v94 = vld [vmem:[#allocation5 + $0x24] sm:$0xff]
    %v95 = vld [vmem:[#allocation5 + $0x2c] sm:$0xf]
    %v96 = vld [vmem:[#allocation5 + $0x30] sm:$0xff]
    %v97 = vld [vmem:[#allocation5 + $0x38] sm:$0xf]
    %v98 = vld [vmem:[#allocation5 + $0x3c] sm:$0xff]
    %v99 = vld [vmem:[#allocation5 + $0x44] sm:$0xf]
    %v100 = vld [vmem:[#allocation5 + $0x48] sm:$0xff]
    %v101 = vld [vmem:[#allocation5 + $0x50] sm:$0xf]
    %v102 = vld [vmem:[#allocation5 + $0x54] sm:$0xff]
    %v103 = vld [vmem:[#allocation5 + $0x5c] sm:$0xf]
    %v104 = vld [vmem:[#allocation5 + $0x60] sm:$0xff]
    %v105 = vld [vmem:[#allocation5 + $0x68] sm:$0xf]
    %v106 = vld [vmem:[#allocation5 + $0x6c] sm:$0xff]
    %v107 = vld [vmem:[#allocation5 + $0x74] sm:$0xf]
    %v108 = vld [vmem:[#allocation5 + $0x78] sm:$0xff]
    %v109 = vld [vmem:[#allocation5 + $0x80] sm:$0xf]
    %v110 = vld [vmem:[#allocation5 + $0x84] sm:$0xff]
    %v111 = vld [vmem:[#allocation5 + $0x8c] sm:$0xf]
    %v112 = vld [vmem:[#allocation5 + $0x90] sm:$0xff]
    %v113 = vld [vmem:[#allocation5 + $0x98] sm:$0xf]
    %v114 = vld [vmem:[#allocation5 + $0x9c] sm:$0xff]
    %v115 = vld [vmem:[#allocation5 + $0xa4] sm:$0xf]
    %v116 = vld [vmem:[#allocation5 + $0xa8] sm:$0xff]
    %v117 = vld [vmem:[#allocation5 + $0xb0] sm:$0xf]
    %v118 = vld [vmem:[#allocation5 + $0xb4] sm:$0xff]
    %v119 = vld [vmem:[#allocation5 + $0xbc] sm:$0xf]
    %v120 = vld [vmem:[#allocation5 + $0xc0] sm:$0xff]
    %v121 = vld [vmem:[#allocation5 + $0xc8] sm:$0xf]
    %v122 = vld [vmem:[#allocation5 + $0xcc] sm:$0xff]
    %v123 = vld [vmem:[#allocation5 + $0xd4] sm:$0xf]
    %v124 = vld [vmem:[#allocation5 + $0xd8] sm:$0xff]
    %v125 = vld [vmem:[#allocation5 + $0xe0] sm:$0xf]
    %v126 = vld [vmem:[#allocation5 + $0xe4] sm:$0xff]
    %v127 = vld [vmem:[#allocation5 + $0xec] sm:$0xf]
    %v128 = vld [vmem:[#allocation5 + $0xf0] sm:$0xff]
    %v129 = vld [vmem:[#allocation5 + $0xf8] sm:$0xf]
    %v130 = vld [vmem:[#allocation5 + $0xfc] sm:$0xff]
    %v131 = vld [vmem:[#allocation5 + $0x104] sm:$0xf]
    %v132 = vld [vmem:[#allocation5 + $0x108] sm:$0xff]
    %v133 = vld [vmem:[#allocation5 + $0x110] sm:$0xf]
    %v134 = vld [vmem:[#allocation5 + $0x114] sm:$0xff]
    %v135 = vld [vmem:[#allocation5 + $0x11c] sm:$0xf]
    %v136 = vld [vmem:[#allocation5 + $0x120] sm:$0xff]
    %v137 = vld [vmem:[#allocation5 + $0x128] sm:$0xf]
    %v138 = vld [vmem:[#allocation5 + $0x12c] sm:$0xff]
    %v139 = vld [vmem:[#allocation5 + $0x134] sm:$0xf]
    %v140 = vld [vmem:[#allocation5 + $0x138] sm:$0xff]
    %v141 = vld [vmem:[#allocation5 + $0x140] sm:$0xf]
    %v142 = vld [vmem:[#allocation5 + $0x144] sm:$0xff]
    %v143 = vld [vmem:[#allocation5 + $0x14c] sm:$0xf]
    %v144 = vld [vmem:[#allocation5 + $0x150] sm:$0xff]
    %v145 = vld [vmem:[#allocation5 + $0x158] sm:$0xf]
    %v146 = vld [vmem:[#allocation5 + $0x15c] sm:$0xff]
    %v147 = vld [vmem:[#allocation5 + $0x164] sm:$0xf]
    %v148 = vld [vmem:[#allocation5 + $0x168] sm:$0xff]
    %v149 = vld [vmem:[#allocation5 + $0x170] sm:$0xf]
    %v150 = vld [vmem:[#allocation5 + $0x174] sm:$0xff]
    %v151 = vld [vmem:[#allocation5 + $0x17c] sm:$0xf]
    %v152 = vld [vmem:[#allocation5 + $0x180] sm:$0xff]
    %v153 = vld [vmem:[#allocation5 + $0x188] sm:$0xf]
    %v154 = vld [vmem:[#allocation5 + $0x18c] sm:$0xff]
    %v155 = vld [vmem:[#allocation5 + $0x194] sm:$0xf]
    %v156 = vld [vmem:[#allocation5 + $0x198] sm:$0xff]
    %v157 = vld [vmem:[#allocation5 + $0x1a0] sm:$0xf]
    %v158 = vld [vmem:[#allocation5 + $0x1a4] sm:$0xff]
    %v159 = vld [vmem:[#allocation5 + $0x1ac] sm:$0xf]
    %v160 = vld [vmem:[#allocation5 + $0x1b0] sm:$0xff]
    %v161 = vld [vmem:[#allocation5 + $0x1b8] sm:$0xf]
    %v162 = vld [vmem:[#allocation5 + $0x1bc] sm:$0xff]
    %v163 = vld [vmem:[#allocation5 + $0x1c4] sm:$0xf]
    %v164 = vld [vmem:[#allocation5 + $0x1c8] sm:$0xff]
    %v165 = vld [vmem:[#allocation5 + $0x1d0] sm:$0xf]
    %v166 = vld [vmem:[#allocation5 + $0x1d4] sm:$0xff]
    %v167 = vld [vmem:[#allocation5 + $0x1dc] sm:$0xf]
    %v168 = vld [vmem:[#allocation5 + $0x1e0] sm:$0xff]
    %v169 = vld [vmem:[#allocation5 + $0x1e8] sm:$0xf]
    %v170 = vld [vmem:[#allocation5 + $0x1ec] sm:$0xff]
    %v171 = vld [vmem:[#allocation5 + $0x1f4] sm:$0xf]
    %v172 = vld [vmem:[#allocation5 + $0x1f8] sm:$0xff]
    %v173 = vld [vmem:[#allocation5 + $0x200] sm:$0xf]
    %v174 = vld [vmem:[#allocation5 + $0x204] sm:$0xff]
    %v175 = vld [vmem:[#allocation5 + $0x20c] sm:$0xf]
    %v176 = vld [vmem:[#allocation5 + $0x210] sm:$0xff]
    %v177 = vld [vmem:[#allocation5 + $0x218] sm:$0xf]
    %v178 = vld [vmem:[#allocation5 + $0x21c] sm:$0xff]
    %v179 = vld [vmem:[#allocation5 + $0x224] sm:$0xf]
    %v180 = vld [vmem:[#allocation5 + $0x228] sm:$0xff]
    %v181 = vld [vmem:[#allocation5 + $0x230] sm:$0xf]
    %v182 = vld [vmem:[#allocation5 + $0x234] sm:$0xff]
    %v183 = vld [vmem:[#allocation5 + $0x23c] sm:$0xf]
    %v184 = vld [vmem:[#allocation5 + $0x240] sm:$0xff]
    %v185 = vld [vmem:[#allocation5 + $0x248] sm:$0xf]
    %v186 = vld [vmem:[#allocation5 + $0x24c] sm:$0xff]
    %v187 = vld [vmem:[#allocation5 + $0x254] sm:$0xf]
    %v188 = vld [vmem:[#allocation5 + $0x258] sm:$0xff]
    %v189 = vld [vmem:[#allocation5 + $0x260] sm:$0xf]
    %v190 = vld [vmem:[#allocation5 + $0x264] sm:$0xff]
    %v191 = vld [vmem:[#allocation5 + $0x26c] sm:$0xf]
    %v192 = vld [vmem:[#allocation5 + $0x270] sm:$0xff]
    %v193 = vld [vmem:[#allocation5 + $0x278] sm:$0xf]
    %v194 = vld [vmem:[#allocation5 + $0x27c] sm:$0xff]
    %v195 = vld [vmem:[#allocation5 + $0x284] sm:$0xf]
    %v196 = vld [vmem:[#allocation5 + $0x288] sm:$0xff]
    %v197 = vld [vmem:[#allocation5 + $0x290] sm:$0xf]
    %v198 = vld [vmem:[#allocation5 + $0x294] sm:$0xff]
    %v199 = vld [vmem:[#allocation5 + $0x29c] sm:$0xf]
    %v200 = vld [vmem:[#allocation5 + $0x2a0] sm:$0xff]
    %v201 = vld [vmem:[#allocation5 + $0x2a8] sm:$0xf]
    %v202 = vld [vmem:[#allocation5 + $0x2ac] sm:$0xff]
    %v203 = vld [vmem:[#allocation5 + $0x2b4] sm:$0xf]
    %v204 = vld [vmem:[#allocation5 + $0x2b8] sm:$0xff]
    %v205 = vld [vmem:[#allocation5 + $0x2c0] sm:$0xf]
    %v206 = vld [vmem:[#allocation5 + $0x2c4] sm:$0xff]
    %v207 = vld [vmem:[#allocation5 + $0x2cc] sm:$0xf]
    %v208 = vld [vmem:[#allocation5 + $0x2d0] sm:$0xff]
    %v209 = vld [vmem:[#allocation5 + $0x2d8] sm:$0xf]
    %v210 = vld [vmem:[#allocation5 + $0x2dc] sm:$0xff]
    %v211 = vld [vmem:[#allocation5 + $0x2e4] sm:$0xf]
    %v212 = vld [vmem:[#allocation5 + $0x2e8] sm:$0xff]
    %v213 = vld [vmem:[#allocation5 + $0x2f0] sm:$0xf]
    %v214 = vld [vmem:[#allocation5 + $0x2f4] sm:$0xff]
    %v215 = vld [vmem:[#allocation5 + $0x2fc] sm:$0xf]
    %v216 = vld [vmem:[#allocation7] sm:$0x7]
    %v218 = vperm.slane %v216, 0
    %v219 = vperm.slane %v216, 1
    %v220 = vperm.slane %v216, 2
    %v352 = vunpack.c.l.b16 %v88
    %v353 = vunpack.c.h.b16 %v88
    %v354 = vunpack.c.l.b16 %v89
    %v355 = vunpack.c.l.b16 %v90
    %v356 = vunpack.c.h.b16 %v90
    %v357 = vunpack.c.l.b16 %v91
    %v358 = vunpack.c.l.b16 %v92
    %v359 = vunpack.c.h.b16 %v92
    %v360 = vunpack.c.l.b16 %v93
    %v361 = vunpack.c.l.b16 %v94
    %v362 = vunpack.c.h.b16 %v94
    %v363 = vunpack.c.l.b16 %v95
    %v364 = vunpack.c.l.b16 %v96
    %v365 = vunpack.c.h.b16 %v96
    %v366 = vunpack.c.l.b16 %v97
    %v367 = vunpack.c.l.b16 %v98
    %v368 = vunpack.c.h.b16 %v98
    %v369 = vunpack.c.l.b16 %v99
    %v370 = vunpack.c.l.b16 %v100
    %v371 = vunpack.c.h.b16 %v100
    %v372 = vunpack.c.l.b16 %v101
    %v373 = vunpack.c.l.b16 %v102
    %v374 = vunpack.c.h.b16 %v102
    %v375 = vunpack.c.l.b16 %v103
    %v376 = vunpack.c.l.b16 %v104
    %v377 = vunpack.c.h.b16 %v104
    %v378 = vunpack.c.l.b16 %v105
    %v379 = vunpack.c.l.b16 %v106
    %v380 = vunpack.c.h.b16 %v106
    %v381 = vunpack.c.l.b16 %v107
    %v382 = vunpack.c.l.b16 %v108
    %v383 = vunpack.c.h.b16 %v108
    %v384 = vunpack.c.l.b16 %v109
    %v385 = vunpack.c.l.b16 %v110
    %v386 = vunpack.c.h.b16 %v110
    %v387 = vunpack.c.l.b16 %v111
    %v388 = vunpack.c.l.b16 %v112
    %v389 = vunpack.c.h.b16 %v112
    %v390 = vunpack.c.l.b16 %v113
    %v391 = vunpack.c.l.b16 %v114
    %v392 = vunpack.c.h.b16 %v114
    %v393 = vunpack.c.l.b16 %v115
    %v394 = vunpack.c.l.b16 %v116
    %v395 = vunpack.c.h.b16 %v116
    %v396 = vunpack.c.l.b16 %v117
    %v397 = vunpack.c.l.b16 %v118
    %v398 = vunpack.c.h.b16 %v118
    %v399 = vunpack.c.l.b16 %v119
    %v400 = vunpack.c.l.b16 %v120
    %v401 = vunpack.c.h.b16 %v120
    %v402 = vunpack.c.l.b16 %v121
    %v403 = vunpack.c.l.b16 %v122
    %v404 = vunpack.c.h.b16 %v122
    %v405 = vunpack.c.l.b16 %v123
    %v406 = vunpack.c.l.b16 %v124
    %v407 = vunpack.c.h.b16 %v124
    %v408 = vunpack.c.l.b16 %v125
    %v409 = vunpack.c.l.b16 %v126
    %v410 = vunpack.c.h.b16 %v126
    %v411 = vunpack.c.l.b16 %v127
    %v412 = vunpack.c.l.b16 %v128
    %v413 = vunpack.c.h.b16 %v128
    %v414 = vunpack.c.l.b16 %v129
    %v415 = vunpack.c.l.b16 %v130
    %v416 = vunpack.c.h.b16 %v130
    %v417 = vunpack.c.l.b16 %v131
    %v418 = vunpack.c.l.b16 %v132
    %v419 = vunpack.c.h.b16 %v132
    %v420 = vunpack.c.l.b16 %v133
    %v421 = vunpack.c.l.b16 %v134
    %v422 = vunpack.c.h.b16 %v134
    %v423 = vunpack.c.l.b16 %v135
    %v424 = vunpack.c.l.b16 %v136
    %v425 = vunpack.c.h.b16 %v136
    %v426 = vunpack.c.l.b16 %v137
    %v427 = vunpack.c.l.b16 %v138
    %v428 = vunpack.c.h.b16 %v138
    %v429 = vunpack.c.l.b16 %v139
    %v430 = vunpack.c.l.b16 %v140
    %v431 = vunpack.c.h.b16 %v140
    %v432 = vunpack.c.l.b16 %v141
    %v433 = vunpack.c.l.b16 %v142
    %v434 = vunpack.c.h.b16 %v142
    %v435 = vunpack.c.l.b16 %v143
    %v436 = vunpack.c.l.b16 %v144
    %v437 = vunpack.c.h.b16 %v144
    %v438 = vunpack.c.l.b16 %v145
    %v439 = vunpack.c.l.b16 %v146
    %v440 = vunpack.c.h.b16 %v146
    %v441 = vunpack.c.l.b16 %v147
    %v442 = vunpack.c.l.b16 %v148
    %v443 = vunpack.c.h.b16 %v148
    %v444 = vunpack.c.l.b16 %v149
    %v445 = vunpack.c.l.b16 %v150
    %v446 = vunpack.c.h.b16 %v150
    %v447 = vunpack.c.l.b16 %v151
    %v448 = vunpack.c.l.b16 %v152
    %v449 = vunpack.c.h.b16 %v152
    %v450 = vunpack.c.l.b16 %v153
    %v451 = vunpack.c.l.b16 %v154
    %v452 = vunpack.c.h.b16 %v154
    %v453 = vunpack.c.l.b16 %v155
    %v454 = vunpack.c.l.b16 %v156
    %v455 = vunpack.c.h.b16 %v156
    %v456 = vunpack.c.l.b16 %v157
    %v457 = vunpack.c.l.b16 %v158
    %v458 = vunpack.c.h.b16 %v158
    %v459 = vunpack.c.l.b16 %v159
    %v460 = vunpack.c.l.b16 %v160
    %v461 = vunpack.c.h.b16 %v160
    %v462 = vunpack.c.l.b16 %v161
    %v463 = vunpack.c.l.b16 %v162
    %v464 = vunpack.c.h.b16 %v162
    %v465 = vunpack.c.l.b16 %v163
    %v466 = vunpack.c.l.b16 %v164
    %v467 = vunpack.c.h.b16 %v164
    %v468 = vunpack.c.l.b16 %v165
    %v469 = vunpack.c.l.b16 %v166
    %v470 = vunpack.c.h.b16 %v166
    %v471 = vunpack.c.l.b16 %v167
    %v472 = vunpack.c.l.b16 %v168
    %v473 = vunpack.c.h.b16 %v168
    %v474 = vunpack.c.l.b16 %v169
    %v475 = vunpack.c.l.b16 %v170
    %v476 = vunpack.c.h.b16 %v170
    %v477 = vunpack.c.l.b16 %v171
    %v478 = vunpack.c.l.b16 %v172
    %v479 = vunpack.c.h.b16 %v172
    %v480 = vunpack.c.l.b16 %v173
    %v481 = vunpack.c.l.b16 %v174
    %v482 = vunpack.c.h.b16 %v174
    %v483 = vunpack.c.l.b16 %v175
    %v484 = vunpack.c.l.b16 %v176
    %v485 = vunpack.c.h.b16 %v176
    %v486 = vunpack.c.l.b16 %v177
    %v487 = vunpack.c.l.b16 %v178
    %v488 = vunpack.c.h.b16 %v178
    %v489 = vunpack.c.l.b16 %v179
    %v490 = vunpack.c.l.b16 %v180
    %v491 = vunpack.c.h.b16 %v180
    %v492 = vunpack.c.l.b16 %v181
    %v493 = vunpack.c.l.b16 %v182
    %v494 = vunpack.c.h.b16 %v182
    %v495 = vunpack.c.l.b16 %v183
    %v496 = vunpack.c.l.b16 %v184
    %v497 = vunpack.c.h.b16 %v184
    %v498 = vunpack.c.l.b16 %v185
    %v499 = vunpack.c.l.b16 %v186
    %v500 = vunpack.c.h.b16 %v186
    %v501 = vunpack.c.l.b16 %v187
    %v502 = vunpack.c.l.b16 %v188
    %v503 = vunpack.c.h.b16 %v188
    %v504 = vunpack.c.l.b16 %v189
    %v505 = vunpack.c.l.b16 %v190
    %v506 = vunpack.c.h.b16 %v190
    %v507 = vunpack.c.l.b16 %v191
    %v508 = vunpack.c.l.b16 %v192
    %v509 = vunpack.c.h.b16 %v192
    %v510 = vunpack.c.l.b16 %v193
    %v511 = vunpack.c.l.b16 %v194
    %v512 = vunpack.c.h.b16 %v194
    %v513 = vunpack.c.l.b16 %v195
    %v514 = vunpack.c.l.b16 %v196
    %v515 = vunpack.c.h.b16 %v196
    %v516 = vunpack.c.l.b16 %v197
    %v517 = vunpack.c.l.b16 %v198
    %v518 = vunpack.c.h.b16 %v198
    %v519 = vunpack.c.l.b16 %v199
    %v520 = vunpack.c.l.b16 %v200
    %v521 = vunpack.c.h.b16 %v200
    %v522 = vunpack.c.l.b16 %v201
    %v523 = vunpack.c.l.b16 %v202
    %v524 = vunpack.c.h.b16 %v202
    %v525 = vunpack.c.l.b16 %v203
    %v526 = vunpack.c.l.b16 %v204
    %v527 = vunpack.c.h.b16 %v204
    %v528 = vunpack.c.l.b16 %v205
    %v529 = vunpack.c.l.b16 %v206
    %v530 = vunpack.c.h.b16 %v206
    %v531 = vunpack.c.l.b16 %v207
    %v532 = vunpack.c.l.b16 %v208
    %v533 = vunpack.c.h.b16 %v208
    %v534 = vunpack.c.l.b16 %v209
    %v535 = vunpack.c.l.b16 %v210
    %v536 = vunpack.c.h.b16 %v210
    %v537 = vunpack.c.l.b16 %v211
    %v538 = vunpack.c.l.b16 %v212
    %v539 = vunpack.c.h.b16 %v212
    %v540 = vunpack.c.l.b16 %v213
    %v541 = vunpack.c.l.b16 %v214
    %v542 = vunpack.c.h.b16 %v214
    %v543 = vunpack.c.l.b16 %v215
    %v544 = vpack.c.b16 %v355, %v352
    %v545 = vpack.c.b16 %v356, %v353
    %v546 = vpack.c.b16 %v357, %v354
    %v547 = vpack.c.b16 %v361, %v358
    %v548 = vpack.c.b16 %v362, %v359
    %v549 = vpack.c.b16 %v363, %v360
    %v550 = vpack.c.b16 %v367, %v364
    %v551 = vpack.c.b16 %v368, %v365
    %v552 = vpack.c.b16 %v369, %v366
    %v553 = vpack.c.b16 %v373, %v370
    %v554 = vpack.c.b16 %v374, %v371
    %v555 = vpack.c.b16 %v375, %v372
    %v556 = vpack.c.b16 %v379, %v376
    %v557 = vpack.c.b16 %v380, %v377
    %v558 = vpack.c.b16 %v381, %v378
    %v559 = vpack.c.b16 %v385, %v382
    %v560 = vpack.c.b16 %v386, %v383
    %v561 = vpack.c.b16 %v387, %v384
    %v562 = vpack.c.b16 %v391, %v388
    %v563 = vpack.c.b16 %v392, %v389
    %v564 = vpack.c.b16 %v393, %v390
    %v565 = vpack.c.b16 %v397, %v394
    %v566 = vpack.c.b16 %v398, %v395
    %v567 = vpack.c.b16 %v399, %v396
    %v568 = vpack.c.b16 %v403, %v400
    %v569 = vpack.c.b16 %v404, %v401
    %v570 = vpack.c.b16 %v405, %v402
    %v571 = vpack.c.b16 %v409, %v406
    %v572 = vpack.c.b16 %v410, %v407
    %v573 = vpack.c.b16 %v411, %v408
    %v574 = vpack.c.b16 %v415, %v412
    %v575 = vpack.c.b16 %v416, %v413
    %v576 = vpack.c.b16 %v417, %v414
    %v577 = vpack.c.b16 %v421, %v418
    %v578 = vpack.c.b16 %v422, %v419
    %v579 = vpack.c.b16 %v423, %v420
    %v580 = vpack.c.b16 %v427, %v424
    %v581 = vpack.c.b16 %v428, %v425
    %v582 = vpack.c.b16 %v429, %v426
    %v583 = vpack.c.b16 %v433, %v430
    %v584 = vpack.c.b16 %v434, %v431
    %v585 = vpack.c.b16 %v435, %v432
    %v586 = vpack.c.b16 %v439, %v436
    %v587 = vpack.c.b16 %v440, %v437
    %v588 = vpack.c.b16 %v441, %v438
    %v589 = vpack.c.b16 %v445, %v442
    %v590 = vpack.c.b16 %v446, %v443
    %v591 = vpack.c.b16 %v447, %v444
    %v592 = vpack.c.b16 %v451, %v448
    %v593 = vpack.c.b16 %v452, %v449
    %v594 = vpack.c.b16 %v453, %v450
    %v595 = vpack.c.b16 %v457, %v454
    %v596 = vpack.c.b16 %v458, %v455
    %v597 = vpack.c.b16 %v459, %v456
    %v598 = vpack.c.b16 %v463, %v460
    %v599 = vpack.c.b16 %v464, %v461
    %v600 = vpack.c.b16 %v465, %v462
    %v601 = vpack.c.b16 %v469, %v466
    %v602 = vpack.c.b16 %v470, %v467
    %v603 = vpack.c.b16 %v471, %v468
    %v604 = vpack.c.b16 %v475, %v472
    %v605 = vpack.c.b16 %v476, %v473
    %v606 = vpack.c.b16 %v477, %v474
    %v607 = vpack.c.b16 %v481, %v478
    %v608 = vpack.c.b16 %v482, %v479
    %v609 = vpack.c.b16 %v483, %v480
    %v610 = vpack.c.b16 %v487, %v484
    %v611 = vpack.c.b16 %v488, %v485
    %v612 = vpack.c.b16 %v489, %v486
    %v613 = vpack.c.b16 %v493, %v490
    %v614 = vpack.c.b16 %v494, %v491
    %v615 = vpack.c.b16 %v495, %v492
    %v616 = vpack.c.b16 %v499, %v496
    %v617 = vpack.c.b16 %v500, %v497
    %v618 = vpack.c.b16 %v501, %v498
    %v619 = vpack.c.b16 %v505, %v502
    %v620 = vpack.c.b16 %v506, %v503
    %v621 = vpack.c.b16 %v507, %v504
    %v622 = vpack.c.b16 %v511, %v508
    %v623 = vpack.c.b16 %v512, %v509
    %v624 = vpack.c.b16 %v513, %v510
    %v625 = vpack.c.b16 %v517, %v514
    %v626 = vpack.c.b16 %v518, %v515
    %v627 = vpack.c.b16 %v519, %v516
    %v628 = vpack.c.b16 %v523, %v520
    %v629 = vpack.c.b16 %v524, %v521
    %v630 = vpack.c.b16 %v525, %v522
    %v631 = vpack.c.b16 %v529, %v526
    %v632 = vpack.c.b16 %v530, %v527
    %v633 = vpack.c.b16 %v531, %v528
    %v634 = vpack.c.b16 %v535, %v532
    %v635 = vpack.c.b16 %v536, %v533
    %v636 = vpack.c.b16 %v537, %v534
    %v637 = vpack.c.b16 %v541, %v538
    %v638 = vpack.c.b16 %v542, %v539
    %v639 = vpack.c.b16 %v543, %v540
    %736 = vmatpush.bf16.msra.mxu0 %v565
    %737 = vmatpush.bf16.msra.mxu0 %v562
    %738 = vmatpush.bf16.msra.mxu0 %v559
    %739 = vmatpush.bf16.msra.mxu0 %v556
    %740 = vmatpush.bf16.msra.mxu0 %v553
    %741 = vmatpush.bf16.msra.mxu0 %v550
    %742 = vmatpush.bf16.msra.mxu0 %v547
    %743 = vmatpush.bf16.msra.mxu0 %v544
    %744 = vmatmul.bf16.gmra.mxu0 %v84
    %v745 = vpop.f32.mrf.mxu0
    %v746 = vadd.f32 %v218, %v745
    %v747 = vpop.f32.mrf.mxu0
    %748 = vdwg.mxu0
    %749 = vmatpush.bf16.msra.mxu0 %v589
    %750 = vmatpush.bf16.msra.mxu0 %v586
    %751 = vmatpush.bf16.msra.mxu0 %v583
    %752 = vmatpush.bf16.msra.mxu0 %v580
    %753 = vmatpush.bf16.msra.mxu0 %v577
    %754 = vmatpush.bf16.msra.mxu0 %v574
    %755 = vmatpush.bf16.msra.mxu0 %v571
    %756 = vmatpush.bf16.msra.mxu0 %v568
    %757 = vmatmul.bf16.gmra.mxu0 %v85
    %v758 = vpop.f32.mrf.mxu0
    %v759 = vadd.f32 %v746, %v758
    %v760 = vpop.f32.mrf.mxu0
    %761 = vdwg.mxu0
    %762 = vmatpush.bf16.msra.mxu0 %v613
    %763 = vmatpush.bf16.msra.mxu0 %v610
    %764 = vmatpush.bf16.msra.mxu0 %v607
    %765 = vmatpush.bf16.msra.mxu0 %v604
    %766 = vmatpush.bf16.msra.mxu0 %v601
    %767 = vmatpush.bf16.msra.mxu0 %v598
    %768 = vmatpush.bf16.msra.mxu0 %v595
    %769 = vmatpush.bf16.msra.mxu0 %v592
    %770 = vmatmul.bf16.gmra.mxu0 %v86
    %v771 = vpop.f32.mrf.mxu0
    %v772 = vadd.f32 %v759, %v771
    %v773 = vpop.f32.mrf.mxu0
    %774 = vdwg.mxu0
    %775 = vmatpush.bf16.msra.mxu0 %v637
    %776 = vmatpush.bf16.msra.mxu0 %v634
    %777 = vmatpush.bf16.msra.mxu0 %v631
    %778 = vmatpush.bf16.msra.mxu0 %v628
    %779 = vmatpush.bf16.msra.mxu0 %v625
    %780 = vmatpush.bf16.msra.mxu0 %v622
    %781 = vmatpush.bf16.msra.mxu0 %v619
    %782 = vmatpush.bf16.msra.mxu0 %v616
    %783 = vmatmul.bf16.gmra.mxu0 %v87
    %v784 = vpop.f32.mrf.mxu0
    %v785 = vadd.f32 %v772, %v784
    %v786 = vpop.f32.mrf.mxu0
    %787 = vdwg.mxu0
    %788 = vmatpush.bf16.msra.mxu0 %v566
    %789 = vmatpush.bf16.msra.mxu0 %v563
    %790 = vmatpush.bf16.msra.mxu0 %v560
    %791 = vmatpush.bf16.msra.mxu0 %v557
    %792 = vmatpush.bf16.msra.mxu0 %v554
    %793 = vmatpush.bf16.msra.mxu0 %v551
    %794 = vmatpush.bf16.msra.mxu0 %v548
    %795 = vmatpush.bf16.msra.mxu0 %v545
    %796 = vmatmul.bf16.gmra.mxu0 %v84
    %v797 = vpop.f32.mrf.mxu0
    %v798 = vadd.f32 %v219, %v797
    %v799 = vpop.f32.mrf.mxu0
    %800 = vdwg.mxu0
    %801 = vmatpush.bf16.msra.mxu0 %v590
    %802 = vmatpush.bf16.msra.mxu0 %v587
    %803 = vmatpush.bf16.msra.mxu0 %v584
    %804 = vmatpush.bf16.msra.mxu0 %v581
    %805 = vmatpush.bf16.msra.mxu0 %v578
    %806 = vmatpush.bf16.msra.mxu0 %v575
    %807 = vmatpush.bf16.msra.mxu0 %v572
    %808 = vmatpush.bf16.msra.mxu0 %v569
    %809 = vmatmul.bf16.gmra.mxu0 %v85
    %v810 = vpop.f32.mrf.mxu0
    %v811 = vadd.f32 %v798, %v810
    %v812 = vpop.f32.mrf.mxu0
    %813 = vdwg.mxu0
    %814 = vmatpush.bf16.msra.mxu0 %v614
    %815 = vmatpush.bf16.msra.mxu0 %v611
    %816 = vmatpush.bf16.msra.mxu0 %v608
    %817 = vmatpush.bf16.msra.mxu0 %v605
    %818 = vmatpush.bf16.msra.mxu0 %v602
    %819 = vmatpush.bf16.msra.mxu0 %v599
    %820 = vmatpush.bf16.msra.mxu0 %v596
    %821 = vmatpush.bf16.msra.mxu0 %v593
    %822 = vmatmul.bf16.gmra.mxu0 %v86
    %v823 = vpop.f32.mrf.mxu0
    %v824 = vadd.f32 %v811, %v823
    %v825 = vpop.f32.mrf.mxu0
    %826 = vdwg.mxu0
    %827 = vmatpush.bf16.msra.mxu0 %v638
    %828 = vmatpush.bf16.msra.mxu0 %v635
    %829 = vmatpush.bf16.msra.mxu0 %v632
    %830 = vmatpush.bf16.msra.mxu0 %v629
    %831 = vmatpush.bf16.msra.mxu0 %v626
    %832 = vmatpush.bf16.msra.mxu0 %v623
    %833 = vmatpush.bf16.msra.mxu0 %v620
    %834 = vmatpush.bf16.msra.mxu0 %v617
    %835 = vmatmul.bf16.gmra.mxu0 %v87
    %v836 = vpop.f32.mrf.mxu0
    %v837 = vadd.f32 %v824, %v836
    %v838 = vpop.f32.mrf.mxu0
    %839 = vdwg.mxu0
    %840 = vmatpush.bf16.msra.mxu0 %v567
    %841 = vmatpush.bf16.msra.mxu0 %v564
    %842 = vmatpush.bf16.msra.mxu0 %v561
    %843 = vmatpush.bf16.msra.mxu0 %v558
    %844 = vmatpush.bf16.msra.mxu0 %v555
    %845 = vmatpush.bf16.msra.mxu0 %v552
    %846 = vmatpush.bf16.msra.mxu0 %v549
    %847 = vmatpush.bf16.msra.mxu0 %v546
    %848 = vmatmul.bf16.gmra.mxu0 %v84
    %v849 = vpop.f32.mrf.mxu0
    %v850 = vadd.f32 %v220, %v849
    %v851 = vpop.f32.mrf.mxu0
    %852 = vdwg.mxu0
    %853 = vmatpush.bf16.msra.mxu0 %v591
    %854 = vmatpush.bf16.msra.mxu0 %v588
    %855 = vmatpush.bf16.msra.mxu0 %v585
    %856 = vmatpush.bf16.msra.mxu0 %v582
    %857 = vmatpush.bf16.msra.mxu0 %v579
    %858 = vmatpush.bf16.msra.mxu0 %v576
    %859 = vmatpush.bf16.msra.mxu0 %v573
    %860 = vmatpush.bf16.msra.mxu0 %v570
    %861 = vmatmul.bf16.gmra.mxu0 %v85
    %v862 = vpop.f32.mrf.mxu0
    %v863 = vadd.f32 %v850, %v862
    %v864 = vpop.f32.mrf.mxu0
    %865 = vdwg.mxu0
    %866 = vmatpush.bf16.msra.mxu0 %v615
    %867 = vmatpush.bf16.msra.mxu0 %v612
    %868 = vmatpush.bf16.msra.mxu0 %v609
    %869 = vmatpush.bf16.msra.mxu0 %v606
    %870 = vmatpush.bf16.msra.mxu0 %v603
    %871 = vmatpush.bf16.msra.mxu0 %v600
    %872 = vmatpush.bf16.msra.mxu0 %v597
    %873 = vmatpush.bf16.msra.mxu0 %v594
    %874 = vmatmul.bf16.gmra.mxu0 %v86
    %v875 = vpop.f32.mrf.mxu0
    %v876 = vadd.f32 %v863, %v875
    %v877 = vpop.f32.mrf.mxu0
    %878 = vdwg.mxu0
    %879 = vmatpush.bf16.msra.mxu0 %v639
    %880 = vmatpush.bf16.msra.mxu0 %v636
    %881 = vmatpush.bf16.msra.mxu0 %v633
    %882 = vmatpush.bf16.msra.mxu0 %v630
    %883 = vmatpush.bf16.msra.mxu0 %v627
    %884 = vmatpush.bf16.msra.mxu0 %v624
    %885 = vmatpush.bf16.msra.mxu0 %v621
    %886 = vmatpush.bf16.msra.mxu0 %v618
    %887 = vmatmul.bf16.gmra.mxu0 %v87
    %v888 = vpop.f32.mrf.mxu0
    %v889 = vadd.f32 %v876, %v888
    %v890 = vpop.f32.mrf.mxu0
    %891 = vdwg.mxu0
    %v892 = vmax.f32 %v837, 0.0
    %v893 = vmax.f32 %v889, 0.0
    %v894 = vpack.c.bf16 %v892, %v892
    %v895 = vpack.c.bf16 %v893, %v893
    %v896 = vld [vmem:[#allocation8] sm:$0xf]
    %v897 = vld [vmem:[#allocation8 + $0x4] sm:$0xf]
    %v898 = vld [vmem:[#allocation8 + $0x8] sm:$0xf]
    %v899 = vld [vmem:[#allocation8 + $0xc] sm:$0xf]
    %v900 = vld [vmem:[#allocation8 + $0x10] sm:$0xf]
    %v901 = vld [vmem:[#allocation8 + $0x14] sm:$0xf]
    %v902 = vld [vmem:[#allocation8 + $0x18] sm:$0xf]
    %v903 = vld [vmem:[#allocation8 + $0x1c] sm:$0xf]
    %v904 = vld [vmem:[#allocation8 + $0x20] sm:$0xf]
    %v905 = vld [vmem:[#allocation8 + $0x24] sm:$0xf]
    %v906 = vld [vmem:[#allocation8 + $0x28] sm:$0xf]
    %v907 = vld [vmem:[#allocation8 + $0x2c] sm:$0xf]
    %v908 = vld [vmem:[#allocation8 + $0x30] sm:$0xf]
    %v909 = vld [vmem:[#allocation8 + $0x34] sm:$0xf]
    %v910 = vld [vmem:[#allocation8 + $0x38] sm:$0xf]
    %v911 = vld [vmem:[#allocation8 + $0x3c] sm:$0xf]
    %v912 = vld [vmem:[#allocation8 + $0x40] sm:$0xf]
    %v913 = vld [vmem:[#allocation8 + $0x44] sm:$0xf]
    %v914 = vld [vmem:[#allocation8 + $0x48] sm:$0xf]
    %v915 = vld [vmem:[#allocation8 + $0x4c] sm:$0xf]
    %v916 = vld [vmem:[#allocation8 + $0x50] sm:$0xf]
    %v917 = vld [vmem:[#allocation8 + $0x54] sm:$0xf]
    %v918 = vld [vmem:[#allocation8 + $0x58] sm:$0xf]
    %v919 = vld [vmem:[#allocation8 + $0x5c] sm:$0xf]
    %v920 = vld [vmem:[#allocation8 + $0x60] sm:$0xf]
    %v921 = vld [vmem:[#allocation8 + $0x64] sm:$0xf]
    %v922 = vld [vmem:[#allocation8 + $0x68] sm:$0xf]
    %v923 = vld [vmem:[#allocation8 + $0x6c] sm:$0xf]
    %v924 = vld [vmem:[#allocation8 + $0x70] sm:$0xf]
    %v925 = vld [vmem:[#allocation8 + $0x74] sm:$0xf]
    %v926 = vld [vmem:[#allocation8 + $0x78] sm:$0xf]
    %v927 = vld [vmem:[#allocation8 + $0x7c] sm:$0xf]
    %v928 = vld [vmem:[%s4] sm:$0x1]
    %v930 = vperm.slane %v928, 0
    %v964 = vunpack.c.l.b16 %v896
    %v965 = vunpack.c.l.b16 %v897
    %v966 = vunpack.c.l.b16 %v898
    %v967 = vunpack.c.l.b16 %v899
    %v968 = vunpack.c.l.b16 %v900
    %v969 = vunpack.c.l.b16 %v901
    %v970 = vunpack.c.l.b16 %v902
    %v971 = vunpack.c.l.b16 %v903
    %v972 = vunpack.c.l.b16 %v904
    %v973 = vunpack.c.l.b16 %v905
    %v974 = vunpack.c.l.b16 %v906
    %v975 = vunpack.c.l.b16 %v907
    %v976 = vunpack.c.l.b16 %v908
    %v977 = vunpack.c.l.b16 %v909
    %v978 = vunpack.c.l.b16 %v910
    %v979 = vunpack.c.l.b16 %v911
    %v980 = vunpack.c.l.b16 %v912
    %v981 = vunpack.c.l.b16 %v913
    %v982 = vunpack.c.l.b16 %v914
    %v983 = vunpack.c.l.b16 %v915
    %v984 = vunpack.c.l.b16 %v916
    %v985 = vunpack.c.l.b16 %v917
    %v986 = vunpack.c.l.b16 %v918
    %v987 = vunpack.c.l.b16 %v919
    %v988 = vunpack.c.l.b16 %v920
    %v989 = vunpack.c.l.b16 %v921
    %v990 = vunpack.c.l.b16 %v922
    %v991 = vunpack.c.l.b16 %v923
    %v992 = vunpack.c.l.b16 %v924
    %v993 = vunpack.c.l.b16 %v925
    %v994 = vunpack.c.l.b16 %v926
    %v995 = vunpack.c.l.b16 %v927
    %v996 = vpack.c.b16 %v965, %v964
    %v997 = vpack.c.b16 %v967, %v966
    %v998 = vpack.c.b16 %v969, %v968
    %v999 = vpack.c.b16 %v971, %v970
    %v1000 = vpack.c.b16 %v973, %v972
    %v1001 = vpack.c.b16 %v975, %v974
    %v1002 = vpack.c.b16 %v977, %v976
    %v1003 = vpack.c.b16 %v979, %v978
    %v1004 = vpack.c.b16 %v981, %v980
    %v1005 = vpack.c.b16 %v983, %v982
    %v1006 = vpack.c.b16 %v985, %v984
    %v1007 = vpack.c.b16 %v987, %v986
    %v1008 = vpack.c.b16 %v989, %v988
    %v1009 = vpack.c.b16 %v991, %v990
    %v1010 = vpack.c.b16 %v993, %v992
    %v1011 = vpack.c.b16 %v995, %v994
    %1028 = vmatpush.bf16.msra.mxu0 %v1003
    %1029 = vmatpush.bf16.msra.mxu0 %v1002
    %1030 = vmatpush.bf16.msra.mxu0 %v1001
    %1031 = vmatpush.bf16.msra.mxu0 %v1000
    %1032 = vmatpush.bf16.msra.mxu0 %v999
    %1033 = vmatpush.bf16.msra.mxu0 %v998
    %1034 = vmatpush.bf16.msra.mxu0 %v997
    %1035 = vmatpush.bf16.msra.mxu0 %v996
    %1036 = vmatmul.bf16.gmra.mxu0 %v894
    %v1037 = vpop.f32.mrf.mxu0
    %v1038 = vadd.f32 %v930, %v1037
    %v1039 = vpop.f32.mrf.mxu0
    %1040 = vdwg.mxu0
    %1041 = vmatpush.bf16.msra.mxu0 %v1011
    %1042 = vmatpush.bf16.msra.mxu0 %v1010
    %1043 = vmatpush.bf16.msra.mxu0 %v1009
    %1044 = vmatpush.bf16.msra.mxu0 %v1008
    %1045 = vmatpush.bf16.msra.mxu0 %v1007
    %1046 = vmatpush.bf16.msra.mxu0 %v1006
    %1047 = vmatpush.bf16.msra.mxu0 %v1005
    %1048 = vmatpush.bf16.msra.mxu0 %v1004
    %1049 = vmatmul.bf16.gmra.mxu0 %v895
    %v1050 = vpop.f32.mrf.mxu0
    %v1051 = vadd.f32 %v1038, %v1050
    %v1052 = vpop.f32.mrf.mxu0
    %1053 = vdwg.mxu0
    %v1054 = vadd.f32 %v785, %v1051
    %1055 = vst [vmem:[#allocation10] sm:$0xff] %v1054
    // Predicated region
    $region38: #{tpu_custom_call.1} parent=1 // pred_check
      _
    $region39: #{tpu_custom_call.1} parent=1 // pred_check_branch
      %1057 = sbr.rel (0) target = $region41
    $region40: #{tpu_custom_call.1} parent=1 // pred_region
      %1059 = vsyncadd [#allocation4], 0
      %s1061 = sshll.u32 [#allocation10], 4
      %s1062 = int_to_ptr.vmem [resolvable:$true] %s1061
      %s1063 = sshll.u32 %s5, 4
      %s1064 = int_to_ptr.hbm [resolvable:$true] %s1063
      %1066 = dma.vmem_to_hbm [thread:$0]  %s1062, 128, %s1064, [#allocation4]
    $region41: #{tpu_custom_call.1} parent=1 // pred_fallthru
      _
    // Predicated region
    $region42: #{tpu_custom_call.1} parent=1 // pred_check
      _
    $region43: #{tpu_custom_call.1} parent=1 // pred_check_branch
      %1068 = sbr.rel (0) target = $region45
    $region44: #{tpu_custom_call.1} parent=1 // pred_region
      %1070 = dma.done [#allocation4], 128
    $region45: #{tpu_custom_call.1} parent=1 // pred_fallthru
      _
    %1071 = vsyncpa [#allocation3], 1
    %1072 = vsyncpa [#allocation6], 1
    %1073 = vsyncpa [#allocation9], 1
    %1074 = vsyncpa [#allocation4], 1

</llo_original>
